<compile_context>
chip_gen: v5e
topology: v5e:2x2
jax: 0.10.0
libtpu: 0.0.40
codegen_flags: <defaults>
</compile_context>

<pallas_src>
import jax
import jax.numpy as jnp
from jax import lax
from jax.experimental import pallas as pl
from jax.experimental.pallas import tpu as pltpu


def _pick_block_len(T):
    if T % 256 == 0:
        return 256
    if T % 128 == 0:
        return 128
    return T


def _qkv_projection(x, w_query, w_key, w_value, *, blk, scale, out_dtype):
    """Single pass over x: Q (pre-scaled), K, V. x is read from HBM once."""
    B, T, d_in = x.shape
    d_out = w_query.shape[1]
    nblk = T // blk

    def kernel(x_ref, wq_ref, wk_ref, wv_ref, q_ref, k_ref, v_ref):
        xb = x_ref[...]
        q = jnp.dot(xb, wq_ref[...], preferred_element_type=jnp.float32)
        # Fold 1/sqrt(d_out) into Q once: O(T*d_out), not O(T^2).
        q_ref[...] = (q * scale).astype(q_ref.dtype)
        k_ref[...] = jnp.dot(
            xb, wk_ref[...], preferred_element_type=jnp.float32).astype(k_ref.dtype)
        v_ref[...] = jnp.dot(
            xb, wv_ref[...], preferred_element_type=jnp.float32).astype(v_ref.dtype)

    x_spec = pl.BlockSpec((pl.Squeezed(), blk, d_in), lambda b, i: (b, i, 0))
    w_spec = pl.BlockSpec((d_in, d_out), lambda b, i: (0, 0))
    o_spec = pl.BlockSpec((pl.Squeezed(), blk, d_out), lambda b, i: (b, i, 0))
    out_sds = jax.ShapeDtypeStruct((B, T, d_out), out_dtype)

    return pl.pallas_call(
        kernel,
        out_shape=(out_sds, out_sds, out_sds),
        grid_spec=pltpu.PrefetchScalarGridSpec(
            num_scalar_prefetch=0,
            grid=(B, nblk),
            in_specs=[x_spec, w_spec, w_spec, w_spec],
            out_specs=(o_spec, o_spec, o_spec),
        ),
        compiler_params=pltpu.CompilerParams(
            dimension_semantics=("parallel", "parallel"),
            vmem_limit_bytes=32 * 1024 * 1024,
        ),
    )(x, w_query, w_key, w_value)


def _flash_causal_attention(q, k, v, *, blk, out_dtype, approx_recip):
    """Flash attention over a flattened lower-triangular (qi, ki) schedule."""
    B, T, d_out = q.shape
    nblk = T // blk

    # Only ki <= qi blocks exist in the schedule; ki ascends within each qi,
    # so ki == qi is always the last kv step of a query block.
    qi_list, ki_list = [], []
    for qi in range(nblk):
        for ki in range(qi + 1):
            qi_list.append(qi)
            ki_list.append(ki)
    qi_ids = jnp.array(qi_list, dtype=jnp.int32)
    ki_ids = jnp.array(ki_list, dtype=jnp.int32)
    nsteps = nblk * (nblk + 1) // 2

    def kernel(qi_ref, ki_ref, q_ref, k_ref, v_ref, o_ref, m_sc, l_sc, acc_sc):
        t = pl.program_id(1)
        qi = qi_ref[t]
        ki = ki_ref[t]

        @pl.when(ki == 0)
        def _init():
            m_sc[...] = jnp.full(m_sc.shape, -jnp.inf, jnp.float32)
            l_sc[...] = jnp.zeros(l_sc.shape, jnp.float32)
            acc_sc[...] = jnp.zeros(acc_sc.shape, jnp.float32)

        # scores = q @ k^T, contracting the last dims (no explicit transpose).
        s = lax.dot_general(
            q_ref[...], k_ref[...],
            dimension_numbers=(((1,), (1,)), ((), ())),
            preferred_element_type=jnp.float32)               # (blk, blk) f32

        def online_softmax_update(s_blk):
            m_prev = m_sc[...]
            m_new = jnp.maximum(m_prev, jnp.max(s_blk, axis=-1, keepdims=True))
            alpha = jnp.exp(m_prev - m_new)
            p = jnp.exp(s_blk - m_new)
            l_sc[...] = alpha * l_sc[...] + jnp.sum(p, axis=-1, keepdims=True)
            acc_sc[...] = alpha * acc_sc[...] + jnp.dot(
                p.astype(v_ref.dtype), v_ref[...],
                preferred_element_type=jnp.float32)
            m_sc[...] = m_new

        # Off-diagonal block (ki < qi): fully un-masked -> no iota/where work.
        @pl.when(ki < qi)
        def _off_diag():
            online_softmax_update(s)

        # Diagonal block (ki == qi): apply causal mask, then finalize — this is
        # the last kv step for this query block in the lower-tri schedule.
        @pl.when(ki == qi)
        def _diag_and_finalize():
            row = lax.broadcasted_iota(jnp.int32, (blk, blk), 0)
            col = lax.broadcasted_iota(jnp.int32, (blk, blk), 1)
            online_softmax_update(jnp.where(col > row, -jnp.inf, s))
            inv_l = pl.reciprocal(l_sc[...], approx=approx_recip)
            o_ref[...] = (acc_sc[...] * inv_l).astype(o_ref.dtype)

    # index_maps receive the scalar-prefetch refs as trailing positional args.
    q_spec = pl.BlockSpec((pl.Squeezed(), blk, d_out),
                          lambda b, t, qi_tbl, ki_tbl: (b, qi_tbl[t], 0))
    kv_spec = pl.BlockSpec((pl.Squeezed(), blk, d_out),
                           lambda b, t, qi_tbl, ki_tbl: (b, ki_tbl[t], 0))
    o_spec = pl.BlockSpec((pl.Squeezed(), blk, d_out),
                          lambda b, t, qi_tbl, ki_tbl: (b, qi_tbl[t], 0))

    return pl.pallas_call(
        kernel,
        out_shape=jax.ShapeDtypeStruct((B, T, d_out), out_dtype),
        grid_spec=pltpu.PrefetchScalarGridSpec(
            num_scalar_prefetch=2,
            grid=(B, nsteps),
            in_specs=[q_spec, kv_spec, kv_spec],
            out_specs=o_spec,
            scratch_shapes=[
                pltpu.VMEM((blk, 1), jnp.float32),      # running max m_i
                pltpu.VMEM((blk, 1), jnp.float32),      # running denom l_i
                pltpu.VMEM((blk, d_out), jnp.float32),  # output accumulator
            ],
        ),
        compiler_params=pltpu.CompilerParams(
            dimension_semantics=("parallel", "arbitrary"),
            vmem_limit_bytes=32 * 1024 * 1024,
        ),
    )(qi_ids, ki_ids, q, k, v)


def causal_attention(x, w_query, w_key, w_value, *, block_len=None,
                     compute_dtype=None):
    """Causal self-attention forward.

    x: [B, T, d_in]; w_*: [d_in, d_out] (already transposed from torch layout).
    compute_dtype: dtype fed to the MXU (e.g. jnp.bfloat16 on v6e/v7x); softmax
    math and accumulation stay f32. Returns [B, T, d_out] in x.dtype.
    """
    B, T, d_in = x.shape
    d_out = w_query.shape[1]
    blk = _pick_block_len(T) if block_len is None else block_len
    assert T % blk == 0, "T must be divisible by block_len"
    scale = float(d_out) ** -0.5
    out_dtype = x.dtype
    cdt = x.dtype if compute_dtype is None else jnp.dtype(compute_dtype)

    xc = x.astype(cdt)
    wq = w_query.astype(cdt)
    wk = w_key.astype(cdt)
    wv = w_value.astype(cdt)

    q, k, v = _qkv_projection(xc, wq, wk, wv, blk=blk, scale=scale, out_dtype=cdt)
    return _flash_causal_attention(
        q, k, v, blk=blk, out_dtype=out_dtype,
        approx_recip=(jnp.dtype(cdt) == jnp.dtype(jnp.bfloat16)))


def reference_causal_attention(x, w_query, w_key, w_value):
    """Pure-JAX reference mirroring the PyTorch forward (eval-mode dropout)."""
    q = x @ w_query
    k = x @ w_key
    v = x @ w_value
    scores = jnp.einsum("btd,bsd->bts", q, k)
    T = x.shape[1]
    mask = jnp.triu(jnp.ones((T, T), dtype=bool), k=1)
    scores = jnp.where(mask[None, :, :], -jnp.inf, scores)
    weights = jax.nn.softmax(scores / (q.shape[-1] ** 0.5), axis=-1)
    return jnp.einsum("bts,bsd->btd", weights, v)


if __name__ == "__main__":
    # --- Test 1: the module's own toy shapes (d_in=3, d_out=2, T=6, B=2) ---
    d_in, d_out, T, B = 3, 2, 6, 2

    inputs = jnp.array(
        [[0.43, 0.15, 0.89],
         [0.55, 0.87, 0.66],
         [0.57, 0.85, 0.64],
         [0.22, 0.58, 0.33],
         [0.77, 0.25, 0.10],
         [0.05, 0.80, 0.55]], dtype=jnp.float32)
    x = jnp.stack([inputs, inputs], axis=0)  # (B, T, d_in)

    key = jax.random.PRNGKey(0)
    kq, kk, kv, kx2, kq2, kk2, kv2 = jax.random.split(key, 7)
    bound = 1.0 / (d_in ** 0.5)
    w_query = jax.random.uniform(kq, (d_in, d_out), jnp.float32, -bound, bound)
    w_key = jax.random.uniform(kk, (d_in, d_out), jnp.float32, -bound, bound)
    w_value = jax.random.uniform(kv, (d_in, d_out), jnp.float32, -bound, bound)

    out = causal_attention(x, w_query, w_key, w_value)
    out = jax.block_until_ready(out)
    ref = reference_causal_attention(x, w_query, w_key, w_value)
    assert out.shape == (B, T, d_out)
    assert jnp.allclose(out, ref, atol=1e-5, rtol=1e-5), "mismatch (toy, f32)"

    # --- Test 2: multi-block path, f32 (online softmax + lower-tri grid) ---
    B2, T2, d_in2, d_out2 = 2, 256, 64, 64
    bound2 = 1.0 / (d_in2 ** 0.5)
    x2 = jax.random.normal(kx2, (B2, T2, d_in2), jnp.float32) * 0.1
    wq2 = jax.random.uniform(kq2, (d_in2, d_out2), jnp.float32, -bound2, bound2)
    wk2 = jax.random.uniform(kk2, (d_in2, d_out2), jnp.float32, -bound2, bound2)
    wv2 = jax.random.uniform(kv2, (d_in2, d_out2), jnp.float32, -bound2, bound2)

    out2 = causal_attention(x2, wq2, wk2, wv2, block_len=128)
    out2 = jax.block_until_ready(out2)
    ref2 = reference_causal_attention(x2, wq2, wk2, wv2)
    assert out2.shape == (B2, T2, d_out2)
    assert jnp.allclose(out2, ref2, atol=1e-4, rtol=1e-4), "mismatch (tiled, f32)"

    # --- Test 3: bf16 MXU path (v6e/v7x-style), f32 accumulation/softmax ---
    out3 = causal_attention(x2, wq2, wk2, wv2, block_len=128,
                            compute_dtype=jnp.bfloat16)
    out3 = jax.block_until_ready(out3)
    assert out3.shape == (B2, T2, d_out2)
    assert jnp.allclose(out3, ref2, atol=2e-2, rtol=2e-2), "mismatch (tiled, bf16)"

    print("KERNEL_OK")
</pallas_src>

<mosaic_0001>
module attributes {stable_mosaic.version = 11 : i64} {
  func.func @kernel(%arg0: i32, %arg1: i32, %arg2: memref<1x6x3xf32, #tpu.memory_space<vmem>>, %arg3: memref<3x2xf32, #tpu.memory_space<vmem>>, %arg4: memref<3x2xf32, #tpu.memory_space<vmem>>, %arg5: memref<3x2xf32, #tpu.memory_space<vmem>>, %arg6: memref<1x6x2xf32, #tpu.memory_space<vmem>>, %arg7: memref<1x6x2xf32, #tpu.memory_space<vmem>>, %arg8: memref<1x6x2xf32, #tpu.memory_space<vmem>>) attributes {dimension_semantics = [#tpu.dimension_semantics<parallel>, #tpu.dimension_semantics<parallel>], iteration_bounds = array<i64: 2, 1>, scalar_prefetch = 0 : i64, scratch_operands = 0 : i64, tpu.core_type = #tpu.core_type<tc>, window_params = [{transform_indices = @transform_0, window_bounds = array<i64: 1, 6, 3>}, {pipeline_mode = #tpu.pipeline_mode<synchronous>, transform_indices = @transform_1, window_bounds = array<i64: 3, 2>}, {pipeline_mode = #tpu.pipeline_mode<synchronous>, transform_indices = @transform_2, window_bounds = array<i64: 3, 2>}, {pipeline_mode = #tpu.pipeline_mode<synchronous>, transform_indices = @transform_3, window_bounds = array<i64: 3, 2>}, {transform_indices = @transform_4, window_bounds = array<i64: 1, 6, 2>}, {transform_indices = @transform_5, window_bounds = array<i64: 1, 6, 2>}, {transform_indices = @transform_6, window_bounds = array<i64: 1, 6, 2>}]} {
    %c0 = arith.constant 0 : index
    %c0_0 = arith.constant 0 : index
    %c0_1 = arith.constant 0 : index
    %0 = vector.load %arg2[%c0, %c0_0, %c0_1] : memref<1x6x3xf32, #tpu.memory_space<vmem>>, vector<1x6x3xf32>
    %1 = vector.shape_cast %0 : vector<1x6x3xf32> to vector<6x3xf32>
    %c0_2 = arith.constant 0 : index
    %c0_3 = arith.constant 0 : index
    %2 = vector.load %arg3[%c0_2, %c0_3] : memref<3x2xf32, #tpu.memory_space<vmem>>, vector<3x2xf32>
    %cst = arith.constant dense<0.000000e+00> : vector<6x2xf32>
    %3 = tpu.matmul %1, %2, %cst {dimension_numbers = #tpu.dot_dimension_numbers<[1], [0], [0], [1], [0, 0, 1, 1], [], []>} : vector<6x3xf32>, vector<3x2xf32>, vector<6x2xf32> -> vector<6x2xf32>
    %cst_4 = arith.constant 0.707106769 : f32
    %4 = vector.broadcast %cst_4 : f32 to vector<6x2xf32>
    %5 = arith.mulf %3, %4 : vector<6x2xf32>
    %c0_5 = arith.constant 0 : index
    %c0_6 = arith.constant 0 : index
    %c0_7 = arith.constant 0 : index
    %6 = vector.load %arg6[%c0_5, %c0_6, %c0_7] : memref<1x6x2xf32, #tpu.memory_space<vmem>>, vector<1x6x2xf32>
    %7 = vector.shape_cast %6 : vector<1x6x2xf32> to vector<6x2xf32>
    %8 = vector.shape_cast %5 : vector<6x2xf32> to vector<1x6x2xf32>
    tpu.vector_store %arg6[%c0_5, %c0_6, %c0_7], %8 {strides = array<i32>} : memref<1x6x2xf32, #tpu.memory_space<vmem>>, vector<1x6x2xf32>,
    %c0_8 = arith.constant 0 : index
    %c0_9 = arith.constant 0 : index
    %9 = vector.load %arg4[%c0_8, %c0_9] : memref<3x2xf32, #tpu.memory_space<vmem>>, vector<3x2xf32>
    %cst_10 = arith.constant dense<0.000000e+00> : vector<6x2xf32>
    %10 = tpu.matmul %1, %9, %cst_10 {dimension_numbers = #tpu.dot_dimension_numbers<[1], [0], [0], [1], [0, 0, 1, 1], [], []>} : vector<6x3xf32>, vector<3x2xf32>, vector<6x2xf32> -> vector<6x2xf32>
    %c0_11 = arith.constant 0 : index
    %c0_12 = arith.constant 0 : index
    %c0_13 = arith.constant 0 : index
    %11 = vector.load %arg7[%c0_11, %c0_12, %c0_13] : memref<1x6x2xf32, #tpu.memory_space<vmem>>, vector<1x6x2xf32>
    %12 = vector.shape_cast %11 : vector<1x6x2xf32> to vector<6x2xf32>
    %13 = vector.shape_cast %10 : vector<6x2xf32> to vector<1x6x2xf32>
    tpu.vector_store %arg7[%c0_11, %c0_12, %c0_13], %13 {strides = array<i32>} : memref<1x6x2xf32, #tpu.memory_space<vmem>>, vector<1x6x2xf32>,
    %c0_14 = arith.constant 0 : index
    %c0_15 = arith.constant 0 : index
    %14 = vector.load %arg5[%c0_14, %c0_15] : memref<3x2xf32, #tpu.memory_space<vmem>>, vector<3x2xf32>
    %cst_16 = arith.constant dense<0.000000e+00> : vector<6x2xf32>
    %15 = tpu.matmul %1, %14, %cst_16 {dimension_numbers = #tpu.dot_dimension_numbers<[1], [0], [0], [1], [0, 0, 1, 1], [], []>} : vector<6x3xf32>, vector<3x2xf32>, vector<6x2xf32> -> vector<6x2xf32>
    %c0_17 = arith.constant 0 : index
    %c0_18 = arith.constant 0 : index
    %c0_19 = arith.constant 0 : index
    %16 = vector.load %arg8[%c0_17, %c0_18, %c0_19] : memref<1x6x2xf32, #tpu.memory_space<vmem>>, vector<1x6x2xf32>
    %17 = vector.shape_cast %16 : vector<1x6x2xf32> to vector<6x2xf32>
    %18 = vector.shape_cast %15 : vector<6x2xf32> to vector<1x6x2xf32>
    tpu.vector_store %arg8[%c0_17, %c0_18, %c0_19], %18 {strides = array<i32>} : memref<1x6x2xf32, #tpu.memory_space<vmem>>, vector<1x6x2xf32>,
    return
  }
  func.func @transform_0(%arg0: i32, %arg1: i32) -> (i32, i32, i32) {
    %c0_i32 = arith.constant 0 : i32
    %c0_i32_0 = arith.constant 0 : i32
    return %arg0, %arg1, %c0_i32 : i32, i32, i32
  }
  func.func @transform_1(%arg0: i32, %arg1: i32) -> (i32, i32) {
    %c0_i32 = arith.constant 0 : i32
    %c0_i32_0 = arith.constant 0 : i32
    %c0_i32_1 = arith.constant 0 : i32
    return %c0_i32, %c0_i32_0 : i32, i32
  }
  func.func @transform_2(%arg0: i32, %arg1: i32) -> (i32, i32) {
    %c0_i32 = arith.constant 0 : i32
    %c0_i32_0 = arith.constant 0 : i32
    %c0_i32_1 = arith.constant 0 : i32
    return %c0_i32, %c0_i32_0 : i32, i32
  }
  func.func @transform_3(%arg0: i32, %arg1: i32) -> (i32, i32) {
    %c0_i32 = arith.constant 0 : i32
    %c0_i32_0 = arith.constant 0 : i32
    %c0_i32_1 = arith.constant 0 : i32
    return %c0_i32, %c0_i32_0 : i32, i32
  }
  func.func @transform_4(%arg0: i32, %arg1: i32) -> (i32, i32, i32) {
    %c0_i32 = arith.constant 0 : i32
    %c0_i32_0 = arith.constant 0 : i32
    return %arg0, %arg1, %c0_i32 : i32, i32, i32
  }
  func.func @transform_5(%arg0: i32, %arg1: i32) -> (i32, i32, i32) {
    %c0_i32 = arith.constant 0 : i32
    %c0_i32_0 = arith.constant 0 : i32
    return %arg0, %arg1, %c0_i32 : i32, i32, i32
  }
  func.func @transform_6(%arg0: i32, %arg1: i32) -> (i32, i32, i32) {
    %c0_i32 = arith.constant 0 : i32
    %c0_i32_0 = arith.constant 0 : i32
    return %arg0, %arg1, %c0_i32 : i32, i32, i32
  }
}

</mosaic_0001>

<llo_original>
// kernel: tpu_custom_call.1
$region0: #{tpu_custom_call.1}
  #allocation0 [shape = 'u32[]', space=smem, size = 0x4, offset = 0x4, fixed_abs, tag = 'smem constant byte address 0x4 - core index']
  #allocation1 [shape = 'u32[72,128]{1,0:T(1,128)}', space=vmem, size = 0x9000, scoped, tag = 'internal scratch']
  %s0 = inlined_call_operand.vmem [shape: f32[2,6,3], index: 0, kind: input, shape index: {}]
  %s1 = inlined_call_operand.vmem [shape: f32[3,2], index: 1, kind: input, shape index: {}]
  %s2 = inlined_call_operand.vmem [shape: f32[3,2], index: 2, kind: input, shape index: {}]
  %s3 = inlined_call_operand.vmem [shape: f32[3,2], index: 3, kind: input, shape index: {}]
  %s4 = inlined_call_operand.vmem [shape: f32[2,6,2], index: 4, kind: output, shape index: {0}]
  %s5 = inlined_call_operand.vmem [shape: f32[2,6,2], index: 5, kind: output, shape index: {1}]
  %s6 = inlined_call_operand.vmem [shape: f32[2,6,2], index: 6, kind: output, shape index: {2}]
  %7 = xla_tuple %s4, %s5, %s6
  %s8 = sld [smem:[#allocation0]]
  $region65: #{tpu_custom_call.1} parent=0
    _
  %s10 = ssub.s32 1, %s8
  %s11 = scalar_select 0, %s10, %s8
  loop: start=0, step=1, limit=4
  $region2: #{tpu_custom_call.1} parent=0 // loop_pre_header
    _
  $region3: #{tpu_custom_call.1} parent=0 // loop_header
    %s13 = sphi 0, %s17
    %p14 = scmp.ge.s32.totalorder %s13, 4
    %s20 = sphi 0, %s32
    %s21 = sphi 0, %s28
    %s22 = sphi 0, %s20
    %s23 = sphi 0, %s21
    %s24 = sphi 0, %s22
    %s25 = sphi 0, %s23
    %s37 = sphi 0, %s39
    %s40 = sphi 0, %s37
    %s41 = sphi 0, %s40
    %s57 = sphi 0, %s41
    %s61 = sphi 0, %s61
    %s63 = sphi 0, %s61
    %s64 = sphi 0, %s63
    %s78 = sphi 0, %s64
    %s82 = sphi 0, %s82
    %s84 = sphi 0, %s82
    %s85 = sphi 0, %s84
    %s99 = sphi 0, %s85
    %s103 = sphi 0, %s103
    %s105 = sphi 0, %s103
    %s106 = sphi 0, %s105
    %s120 = sphi 0, %s106
    %s128 = sphi 0, %s130
    %s131 = sphi 0, %s128
    %s132 = sphi 0, %s131
    %s148 = sphi 0, %s132
    %s156 = sphi 0, %s158
    %s159 = sphi 0, %s156
    %s160 = sphi 0, %s159
    %s176 = sphi 0, %s160
    %s184 = sphi 0, %s186
    %s187 = sphi 0, %s184
    %s188 = sphi 0, %s187
    %s204 = sphi 0, %s188
  $region4: #{tpu_custom_call.1} parent=0 // loop_header_branch
    %16 = sbr.rel (%p14) target = $region8
  $region5: #{tpu_custom_call.1} parent=0 // loop_body
    %s18 = ssub.s32 %s13, 1
    %s19 = ssub.s32 %s13, 2
    %s26 = sadd.s32 1, %s21
    %p27 = scmp.ge.s32.totalorder %s26, 1
    %s28 = scalar_select %p27, 0, %s26
    %s29 = sadd.s32 1, %s20
    %s30 = scalar_select %p27, %s29, %s20
    %p31 = scmp.ge.s32.totalorder %s30, 2
    %s32 = scalar_select %p31, 0, %s30
    %s33 = ssub.s32 %s20, %s32
    %s34 = ssub.s32 %s21, %s28
    %s35 = sor.u32 %s33, %s34
    %p36 = scmp.eq.s32.totalorder %s35, 0
    %s38 = sadd.s32 %s37, 1
    %s39 = scalar_select %p36, %s37, %s38
    %p42 = pneg %p36
    %p43 = scmp.eq.s32.totalorder %s13, 1
    %p44 = por %p42, %p43
    %p45 = scmp.ne.s32.totalorder %s37, %s40
    %p46 = scmp.eq.s32.totalorder %s13, 0
    %p47 = por %p45, %p46
    %p48 = scmp.ne.s32.totalorder %s37, %s40
    %p49 = scmp.eq.s32.totalorder %s18, 1
    %p50 = por %p48, %p49
    %p51 = scmp.ne.s32.totalorder %s40, %s41
    %p52 = scmp.eq.s32.totalorder %s18, 0
    %p53 = por %p51, %p52
    %p54 = scmp.ne.s32.totalorder %s40, %s41
    %p55 = scmp.eq.s32.totalorder %s19, 1
    %p56 = por %p54, %p55
    %p58 = scmp.ne.s32.totalorder %s41, %s57
    %p59 = scmp.eq.s32.totalorder %s19, 0
    %p60 = por %p58, %p59
    %s62 = sadd.s32 %s61, 1
    %p65 = scmp.eq.s32.totalorder %s13, 1
    %p66 = scmp.ne.s32.totalorder %s61, %s63
    %p67 = scmp.eq.s32.totalorder %s13, 0
    %p68 = por %p66, %p67
    %p69 = scmp.ne.s32.totalorder %s61, %s63
    %p70 = scmp.eq.s32.totalorder %s18, 1
    %p71 = por %p69, %p70
    %p72 = scmp.ne.s32.totalorder %s63, %s64
    %p73 = scmp.eq.s32.totalorder %s18, 0
    %p74 = por %p72, %p73
    %p75 = scmp.ne.s32.totalorder %s63, %s64
    %p76 = scmp.eq.s32.totalorder %s19, 1
    %p77 = por %p75, %p76
    %p79 = scmp.ne.s32.totalorder %s64, %s78
    %p80 = scmp.eq.s32.totalorder %s19, 0
    %p81 = por %p79, %p80
    %s83 = sadd.s32 %s82, 1
    %p86 = scmp.eq.s32.totalorder %s13, 1
    %p87 = scmp.ne.s32.totalorder %s82, %s84
    %p88 = scmp.eq.s32.totalorder %s13, 0
    %p89 = por %p87, %p88
    %p90 = scmp.ne.s32.totalorder %s82, %s84
    %p91 = scmp.eq.s32.totalorder %s18, 1
    %p92 = por %p90, %p91
    %p93 = scmp.ne.s32.totalorder %s84, %s85
    %p94 = scmp.eq.s32.totalorder %s18, 0
    %p95 = por %p93, %p94
    %p96 = scmp.ne.s32.totalorder %s84, %s85
    %p97 = scmp.eq.s32.totalorder %s19, 1
    %p98 = por %p96, %p97
    %p100 = scmp.ne.s32.totalorder %s85, %s99
    %p101 = scmp.eq.s32.totalorder %s19, 0
    %p102 = por %p100, %p101
    %s104 = sadd.s32 %s103, 1
    %p107 = scmp.eq.s32.totalorder %s13, 1
    %p108 = scmp.ne.s32.totalorder %s103, %s105
    %p109 = scmp.eq.s32.totalorder %s13, 0
    %p110 = por %p108, %p109
    %p111 = scmp.ne.s32.totalorder %s103, %s105
    %p112 = scmp.eq.s32.totalorder %s18, 1
    %p113 = por %p111, %p112
    %p114 = scmp.ne.s32.totalorder %s105, %s106
    %p115 = scmp.eq.s32.totalorder %s18, 0
    %p116 = por %p114, %p115
    %p117 = scmp.ne.s32.totalorder %s105, %s106
    %p118 = scmp.eq.s32.totalorder %s19, 1
    %p119 = por %p117, %p118
    %p121 = scmp.ne.s32.totalorder %s106, %s120
    %p122 = scmp.eq.s32.totalorder %s19, 0
    %p123 = por %p121, %p122
    %s124 = ssub.s32 %s20, %s32
    %s125 = ssub.s32 %s21, %s28
    %s126 = sor.u32 %s124, %s125
    %p127 = scmp.eq.s32.totalorder %s126, 0
    %s129 = sadd.s32 %s128, 1
    %s130 = scalar_select %p127, %s128, %s129
    %p133 = pneg %p127
    %p134 = scmp.eq.s32.totalorder %s13, 1
    %p135 = por %p133, %p134
    %p136 = scmp.ne.s32.totalorder %s128, %s131
    %p137 = scmp.eq.s32.totalorder %s13, 0
    %p138 = por %p136, %p137
    %p139 = scmp.ne.s32.totalorder %s128, %s131
    %p140 = scmp.eq.s32.totalorder %s18, 1
    %p141 = por %p139, %p140
    %p142 = scmp.ne.s32.totalorder %s131, %s132
    %p143 = scmp.eq.s32.totalorder %s18, 0
    %p144 = por %p142, %p143
    %p145 = scmp.ne.s32.totalorder %s131, %s132
    %p146 = scmp.eq.s32.totalorder %s19, 1
    %p147 = por %p145, %p146
    %p149 = scmp.ne.s32.totalorder %s132, %s148
    %p150 = scmp.eq.s32.totalorder %s19, 0
    %p151 = por %p149, %p150
    %s152 = ssub.s32 %s20, %s32
    %s153 = ssub.s32 %s21, %s28
    %s154 = sor.u32 %s152, %s153
    %p155 = scmp.eq.s32.totalorder %s154, 0
    %s157 = sadd.s32 %s156, 1
    %s158 = scalar_select %p155, %s156, %s157
    %p161 = pneg %p155
    %p162 = scmp.eq.s32.totalorder %s13, 1
    %p163 = por %p161, %p162
    %p164 = scmp.ne.s32.totalorder %s156, %s159
    %p165 = scmp.eq.s32.totalorder %s13, 0
    %p166 = por %p164, %p165
    %p167 = scmp.ne.s32.totalorder %s156, %s159
    %p168 = scmp.eq.s32.totalorder %s18, 1
    %p169 = por %p167, %p168
    %p170 = scmp.ne.s32.totalorder %s159, %s160
    %p171 = scmp.eq.s32.totalorder %s18, 0
    %p172 = por %p170, %p171
    %p173 = scmp.ne.s32.totalorder %s159, %s160
    %p174 = scmp.eq.s32.totalorder %s19, 1
    %p175 = por %p173, %p174
    %p177 = scmp.ne.s32.totalorder %s160, %s176
    %p178 = scmp.eq.s32.totalorder %s19, 0
    %p179 = por %p177, %p178
    %s180 = ssub.s32 %s20, %s32
    %s181 = ssub.s32 %s21, %s28
    %s182 = sor.u32 %s180, %s181
    %p183 = scmp.eq.s32.totalorder %s182, 0
    %s185 = sadd.s32 %s184, 1
    %s186 = scalar_select %p183, %s184, %s185
    %p189 = pneg %p183
    %p190 = scmp.eq.s32.totalorder %s13, 1
    %p191 = por %p189, %p190
    %p192 = scmp.ne.s32.totalorder %s184, %s187
    %p193 = scmp.eq.s32.totalorder %s13, 0
    %p194 = por %p192, %p193
    %p195 = scmp.ne.s32.totalorder %s184, %s187
    %p196 = scmp.eq.s32.totalorder %s18, 1
    %p197 = por %p195, %p196
    %p198 = scmp.ne.s32.totalorder %s187, %s188
    %p199 = scmp.eq.s32.totalorder %s18, 0
    %p200 = por %p198, %p199
    %p201 = scmp.ne.s32.totalorder %s187, %s188
    %p202 = scmp.eq.s32.totalorder %s19, 1
    %p203 = por %p201, %p202
    %p205 = scmp.ne.s32.totalorder %s188, %s204
    %p206 = scmp.eq.s32.totalorder %s19, 0
    %p207 = por %p205, %p206
    %p208 = scmp.le.s32.totalorder 1, %s13
    %p209 = scmp.lt.s32.totalorder %s13, 3
    %p210 = pnand %p208, %p209
    %p211 = pneg %p210
    // Predicated region
    $region9: #{tpu_custom_call.1} parent=5 // pred_check
      _
    $region10: #{tpu_custom_call.1} parent=5 // pred_check_branch
      %213 = sbr.rel (%p210) target = $region12
    $region11: #{tpu_custom_call.1} parent=5 // pred_region
      %s214 = ssub.s32 %s13, 1
      // Predicated region
      $region13: #{tpu_custom_call.1} parent=11 // pred_check
        %p215 = pneg %p74
      $region14: #{tpu_custom_call.1} parent=11 // pred_check_branch
        %217 = sbr.rel (%p215) target = $region16
      $region15: #{tpu_custom_call.1} parent=11 // pred_region
        _
      $region16: #{tpu_custom_call.1} parent=11 // pred_fallthru
        _
      // Predicated region
      $region17: #{tpu_custom_call.1} parent=11 // pred_check
        %p218 = pneg %p95
      $region18: #{tpu_custom_call.1} parent=11 // pred_check_branch
        %220 = sbr.rel (%p218) target = $region20
      $region19: #{tpu_custom_call.1} parent=11 // pred_region
        _
      $region20: #{tpu_custom_call.1} parent=11 // pred_fallthru
        _
      // Predicated region
      $region21: #{tpu_custom_call.1} parent=11 // pred_check
        %p221 = pneg %p116
      $region22: #{tpu_custom_call.1} parent=11 // pred_check_branch
        %223 = sbr.rel (%p221) target = $region24
      $region23: #{tpu_custom_call.1} parent=11 // pred_region
        _
      $region24: #{tpu_custom_call.1} parent=11 // pred_fallthru
        _
    $region12: #{tpu_custom_call.1} parent=5 // pred_fallthru
      _
    %p224 = scmp.lt.s32.totalorder %s13, 2
    // Predicated region
    $region25: #{tpu_custom_call.1} parent=5 // pred_check
      %p225 = pneg %p224
    $region26: #{tpu_custom_call.1} parent=5 // pred_check_branch
      %227 = sbr.rel (%p225) target = $region28
    $region27: #{tpu_custom_call.1} parent=5 // pred_region
      // Predicated region
      $region29: #{tpu_custom_call.1} parent=27 // pred_check
        %p228 = pneg %p47
      $region30: #{tpu_custom_call.1} parent=27 // pred_check_branch
        %230 = sbr.rel (%p228) target = $region32
      $region31: #{tpu_custom_call.1} parent=27 // pred_region
        %p231 = scmp.lt.s32.totalorder %s20, 1
        %s232 = scalar_select %p231, %s20, 1
        %p233 = scmp.lt.s32.totalorder %s21, 0
        %s234 = scalar_select %p233, %s21, 0
        %s235 = sadd.s32 %s234, %s232
        %s236 = smul.addr %s235, 8
        %s237 = scalar_lea.vmem %s0, %s236
      $region32: #{tpu_custom_call.1} parent=27 // pred_fallthru
        _
    $region28: #{tpu_custom_call.1} parent=5 // pred_fallthru
      _
    %p238 = scmp.le.s32.totalorder 1, %s13
    %p239 = scmp.lt.s32.totalorder %s13, 3
    %p240 = pnand %p238, %p239
    %p241 = pneg %p240
    // Predicated region
    $region33: #{tpu_custom_call.1} parent=5 // pred_check
      _
    $region34: #{tpu_custom_call.1} parent=5 // pred_check_branch
      %243 = sbr.rel (%p240) target = $region36
    $region35: #{tpu_custom_call.1} parent=5 // pred_region
      %s244 = ssub.s32 %s13, 1
      %p245 = scmp.lt.s32.totalorder %s22, 1
      %s246 = scalar_select %p245, %s22, 1
      %p247 = scmp.lt.s32.totalorder %s23, 0
      %s248 = scalar_select %p247, %s23, 0
      %s249 = sadd.s32 %s248, %s246
      %s250 = smul.addr %s249, 8
      %s251 = scalar_lea.vmem %s0, %s250
      %p252 = pneg %p53
      %p253 = pneg %p50
      %p254 = pneg %p74
      %p255 = pneg %p71
      %p256 = pneg %p95
      %p257 = pneg %p92
      %p258 = pneg %p116
      %p259 = pneg %p113
      %p260 = pneg %p144
      %p261 = pneg %p141
      %p262 = scmp.lt.s32.totalorder %s22, 1
      %s263 = scalar_select %p262, %s22, 1
      %p264 = scmp.lt.s32.totalorder %s23, 0
      %s265 = scalar_select %p264, %s23, 0
      %s266 = sadd.s32 %s265, %s263
      %s267 = smul.addr %s266, 8
      %s268 = scalar_lea.vmem %s4, %s267
      %p269 = pneg %p172
      %p270 = pneg %p169
      %p271 = scmp.lt.s32.totalorder %s22, 1
      %s272 = scalar_select %p271, %s22, 1
      %p273 = scmp.lt.s32.totalorder %s23, 0
      %s274 = scalar_select %p273, %s23, 0
      %s275 = sadd.s32 %s274, %s272
      %s276 = smul.addr %s275, 8
      %s277 = scalar_lea.vmem %s5, %s276
      %p278 = pneg %p200
      %p279 = pneg %p197
      %p280 = scmp.lt.s32.totalorder %s22, 1
      %s281 = scalar_select %p280, %s22, 1
      %p282 = scmp.lt.s32.totalorder %s23, 0
      %s283 = scalar_select %p282, %s23, 0
      %s284 = sadd.s32 %s283, %s281
      %s285 = smul.addr %s284, 8
      %s286 = scalar_lea.vmem %s6, %s285
      %p287 = scmp.lt.s32.totalorder %s22, 1
      %s288 = scalar_select %p287, %s22, 1
      %p289 = scmp.lt.s32.totalorder %s23, 0
      %s290 = scalar_select %p289, %s23, 0
      %s291 = sadd.s32 %s290, %s288
      %s292 = smul.addr %s291, 8
      %s293 = scalar_lea.vmem %s0, %s292
      %p294 = scmp.lt.s32.totalorder %s22, 1
      %s295 = scalar_select %p294, %s22, 1
      %p296 = scmp.lt.s32.totalorder %s23, 0
      %s297 = scalar_select %p296, %s23, 0
      %s298 = sadd.s32 %s297, %s295
      %s299 = smul.addr %s298, 8
      %s300 = scalar_lea.vmem %s4, %s299
      %p301 = scmp.lt.s32.totalorder %s22, 1
      %s302 = scalar_select %p301, %s22, 1
      %p303 = scmp.lt.s32.totalorder %s23, 0
      %s304 = scalar_select %p303, %s23, 0
      %s305 = sadd.s32 %s304, %s302
      %s306 = smul.addr %s305, 8
      %s307 = scalar_lea.vmem %s5, %s306
      %p308 = scmp.lt.s32.totalorder %s22, 1
      %s309 = scalar_select %p308, %s22, 1
      %p310 = scmp.lt.s32.totalorder %s23, 0
      %s311 = scalar_select %p310, %s23, 0
      %s312 = sadd.s32 %s311, %s309
      %s313 = smul.addr %s312, 8
      %s314 = scalar_lea.vmem %s6, %s313
      %v315 = vld [vmem:[%s293] sm:$0x3f]
      %v316 = vld [vmem:[%s1] sm:$0x7]
      %vm317 = vcmask 23552
      %v319 = vsel %vm317, %v315, 0
      %vm321 = vcmask 1042432
      %v323 = vsel %vm321, %v316, 0
      %325 = vmatpush.msra.mxu0 0.0
      %326 = vmatpush.msra.mxu0 0.0
      %327 = vmatpush.msra.mxu0 0.0
      %328 = vmatpush.msra.mxu0 0.0
      %329 = vmatpush.msra.mxu0 0.0
      %330 = vmatpush.msra.mxu0 0.0
      %331 = vmatpush.msra.mxu0 0.0
      %332 = vmatpush.msra.mxu0 0.0
      %333 = vmatpush.msra.mxu0 0.0
      %334 = vmatpush.msra.mxu0 0.0
      %335 = vmatpush.msra.mxu0 0.0
      %336 = vmatpush.msra.mxu0 0.0
      %337 = vmatpush.msra.mxu0 0.0
      %338 = vmatpush.msra.mxu0 0.0
      %339 = vmatpush.msra.mxu0 0.0
      %340 = vmatpush.msra.mxu0 %v323
      %341 = vmatmul.f32.gmra.mxu0 %v319
      %v342 = vpop.f32.mrf.mxu0
      %v343 = vadd.f32 0.0, %v342
      %344 = vdwg.mxu0
      %v345 = vmul.f32 %v343, 0.70710677
      %vm346 = vcmask 13312
      %347 = vst.msk [vmem:[%s300] sm:$0x3f] %vm346, %v345
      %v348 = vld [vmem:[%s2] sm:$0x7]
      %v350 = vsel %vm321, %v348, 0
      %352 = vmatpush.msra.mxu0 0.0
      %353 = vmatpush.msra.mxu0 0.0
      %354 = vmatpush.msra.mxu0 0.0
      %355 = vmatpush.msra.mxu0 0.0
      %356 = vmatpush.msra.mxu0 0.0
      %357 = vmatpush.msra.mxu0 0.0
      %358 = vmatpush.msra.mxu0 0.0
      %359 = vmatpush.msra.mxu0 0.0
      %360 = vmatpush.msra.mxu0 0.0
      %361 = vmatpush.msra.mxu0 0.0
      %362 = vmatpush.msra.mxu0 0.0
      %363 = vmatpush.msra.mxu0 0.0
      %364 = vmatpush.msra.mxu0 0.0
      %365 = vmatpush.msra.mxu0 0.0
      %366 = vmatpush.msra.mxu0 0.0
      %367 = vmatpush.msra.mxu0 %v350
      %368 = vmatmul.f32.gmra.mxu0 %v319
      %v369 = vpop.f32.mrf.mxu0
      %v370 = vadd.f32 0.0, %v369
      %371 = vdwg.mxu0
      %372 = vst.msk [vmem:[%s307] sm:$0x3f] %vm346, %v370
      %v373 = vld [vmem:[%s3] sm:$0x7]
      %v375 = vsel %vm321, %v373, 0
      %377 = vmatpush.msra.mxu0 0.0
      %378 = vmatpush.msra.mxu0 0.0
      %379 = vmatpush.msra.mxu0 0.0
      %380 = vmatpush.msra.mxu0 0.0
      %381 = vmatpush.msra.mxu0 0.0
      %382 = vmatpush.msra.mxu0 0.0
      %383 = vmatpush.msra.mxu0 0.0
      %384 = vmatpush.msra.mxu0 0.0
      %385 = vmatpush.msra.mxu0 0.0
      %386 = vmatpush.msra.mxu0 0.0
      %387 = vmatpush.msra.mxu0 0.0
      %388 = vmatpush.msra.mxu0 0.0
      %389 = vmatpush.msra.mxu0 0.0
      %390 = vmatpush.msra.mxu0 0.0
      %391 = vmatpush.msra.mxu0 0.0
      %392 = vmatpush.msra.mxu0 %v375
      %393 = vmatmul.f32.gmra.mxu0 %v319
      %v394 = vpop.f32.mrf.mxu0
      %v395 = vadd.f32 0.0, %v394
      %396 = vdwg.mxu0
      %397 = vst.msk [vmem:[%s314] sm:$0x3f] %vm346, %v395
      %p398 = scmp.lt.s32.totalorder %s22, 1
      %s399 = scalar_select %p398, %s22, 1
      %p400 = scmp.lt.s32.totalorder %s23, 0
      %s401 = scalar_select %p400, %s23, 0
      %s402 = sadd.s32 %s401, %s399
      %s403 = smul.addr %s402, 8
      %s404 = scalar_lea.vmem %s4, %s403
      %p405 = scmp.lt.s32.totalorder %s22, 1
      %s406 = scalar_select %p405, %s22, 1
      %p407 = scmp.lt.s32.totalorder %s23, 0
      %s408 = scalar_select %p407, %s23, 0
      %s409 = sadd.s32 %s408, %s406
      %s410 = smul.addr %s409, 8
      %s411 = scalar_lea.vmem %s5, %s410
      %p412 = scmp.lt.s32.totalorder %s22, 1
      %s413 = scalar_select %p412, %s22, 1
      %p414 = scmp.lt.s32.totalorder %s23, 0
      %s415 = scalar_select %p414, %s23, 0
      %s416 = sadd.s32 %s415, %s413
      %s417 = smul.addr %s416, 8
      %s418 = scalar_lea.vmem %s6, %s417
      // Predicated region
      $region37: #{tpu_custom_call.1} parent=35 // pred_check
        %p419 = pneg %p141
      $region38: #{tpu_custom_call.1} parent=35 // pred_check_branch
        %421 = sbr.rel (%p419) target = $region40
      $region39: #{tpu_custom_call.1} parent=35 // pred_region
        _
      $region40: #{tpu_custom_call.1} parent=35 // pred_fallthru
        _
      // Predicated region
      $region41: #{tpu_custom_call.1} parent=35 // pred_check
        %p422 = pneg %p169
      $region42: #{tpu_custom_call.1} parent=35 // pred_check_branch
        %424 = sbr.rel (%p422) target = $region44
      $region43: #{tpu_custom_call.1} parent=35 // pred_region
        _
      $region44: #{tpu_custom_call.1} parent=35 // pred_fallthru
        _
      // Predicated region
      $region45: #{tpu_custom_call.1} parent=35 // pred_check
        %p425 = pneg %p197
      $region46: #{tpu_custom_call.1} parent=35 // pred_check_branch
        %427 = sbr.rel (%p425) target = $region48
      $region47: #{tpu_custom_call.1} parent=35 // pred_region
        _
      $region48: #{tpu_custom_call.1} parent=35 // pred_fallthru
        _
    $region36: #{tpu_custom_call.1} parent=5 // pred_fallthru
      _
    %p428 = scmp.le.s32.totalorder 2, %s13
    // Predicated region
    $region49: #{tpu_custom_call.1} parent=5 // pred_check
      %p429 = pneg %p428
    $region50: #{tpu_custom_call.1} parent=5 // pred_check_branch
      %431 = sbr.rel (%p429) target = $region52
    $region51: #{tpu_custom_call.1} parent=5 // pred_region
      %s432 = ssub.s32 %s13, 2
      // Predicated region
      $region53: #{tpu_custom_call.1} parent=51 // pred_check
        %p433 = pneg %p147
      $region54: #{tpu_custom_call.1} parent=51 // pred_check_branch
        %435 = sbr.rel (%p433) target = $region56
      $region55: #{tpu_custom_call.1} parent=51 // pred_region
        %p436 = scmp.lt.s32.totalorder %s24, 1
        %s437 = scalar_select %p436, %s24, 1
        %p438 = scmp.lt.s32.totalorder %s25, 0
        %s439 = scalar_select %p438, %s25, 0
        %s440 = sadd.s32 %s439, %s437
        %s441 = smul.addr %s440, 8
        %s442 = scalar_lea.vmem %s4, %s441
      $region56: #{tpu_custom_call.1} parent=51 // pred_fallthru
        _
      // Predicated region
      $region57: #{tpu_custom_call.1} parent=51 // pred_check
        %p443 = pneg %p175
      $region58: #{tpu_custom_call.1} parent=51 // pred_check_branch
        %445 = sbr.rel (%p443) target = $region60
      $region59: #{tpu_custom_call.1} parent=51 // pred_region
        %p446 = scmp.lt.s32.totalorder %s24, 1
        %s447 = scalar_select %p446, %s24, 1
        %p448 = scmp.lt.s32.totalorder %s25, 0
        %s449 = scalar_select %p448, %s25, 0
        %s450 = sadd.s32 %s449, %s447
        %s451 = smul.addr %s450, 8
        %s452 = scalar_lea.vmem %s5, %s451
      $region60: #{tpu_custom_call.1} parent=51 // pred_fallthru
        _
      // Predicated region
      $region61: #{tpu_custom_call.1} parent=51 // pred_check
        %p453 = pneg %p203
      $region62: #{tpu_custom_call.1} parent=51 // pred_check_branch
        %455 = sbr.rel (%p453) target = $region64
      $region63: #{tpu_custom_call.1} parent=51 // pred_region
        %p456 = scmp.lt.s32.totalorder %s24, 1
        %s457 = scalar_select %p456, %s24, 1
        %p458 = scmp.lt.s32.totalorder %s25, 0
        %s459 = scalar_select %p458, %s25, 0
        %s460 = sadd.s32 %s459, %s457
        %s461 = smul.addr %s460, 8
        %s462 = scalar_lea.vmem %s6, %s461
      $region64: #{tpu_custom_call.1} parent=51 // pred_fallthru
        _
    $region52: #{tpu_custom_call.1} parent=5 // pred_fallthru
      _
  $region6: #{tpu_custom_call.1} parent=0 // loop_footer
    %s17 = sadd.s32 1, %s13
  $region7: #{tpu_custom_call.1} parent=0 // loop_footer_branch
    %12 = sbr.rel target = $region3
  $region8: #{tpu_custom_call.1} parent=0 // loop_exit
    _

</llo_original>
